<compile_context>
chip_gen: v5e
topology: v5e:2x2
jax: 0.10.0
libtpu: 0.0.40
codegen_flags: <defaults>
</compile_context>

<pallas_src>
import math
from functools import partial

import jax
import jax.numpy as jnp
from jax import lax
from jax.experimental import pallas as pl
from jax.experimental.pallas import tpu as pltpu


def _vmem_limit_bytes() -> int:
    """Generation-aware VMEM limit (~7/8 of physical; 112 MiB v5e/v6e, 56 MiB v7x)."""
    try:
        cap = int(pltpu.get_tpu_info().vmem_capacity_bytes)
    except Exception:
        cap = 128 * 1024 * 1024
    return (cap * 7) // 8


# ----------------------- fused projection + attention kernel -----------------------
def _fused_mha_kernel(qx_ref, kx_ref, vx_ref, w_ref, b_ref, qm_ref, km_ref,
                      o_ref, w_out_ref=None, *,
                      H: int, Hd: int, inv_scale: float, causal,
                      apply_act: bool, neg_slope: float):
    bias = b_ref[...]                                     # (3, D) f32

    def proj(x_ref, w, brow):
        # weights already (in, out) layout & bf16 -> bf16 MXU matmul, f32 accumulate
        y = jnp.dot(x_ref[0].astype(jnp.bfloat16), w,
                    preferred_element_type=jnp.float32) + brow
        if apply_act:                                     # LeakyReLU(0.2)
            y = jnp.where(y >= 0, y, neg_slope * y)
        return y

    q = proj(qx_ref, w_ref[0], bias[0:1, :]) * inv_scale  # (Lq, D) scale folded once
    k = proj(kx_ref, w_ref[1], bias[1:2, :])              # (Lk, D)
    v = proj(vx_ref, w_ref[2], bias[2:3, :])              # (Lk, D)

    # ---- mask -> additive bias, computed once per grid step, shared by all heads ----
    qm = qm_ref[0]                                        # (Lq, 1)
    km = km_ref[0]                                        # (1, Lk)
    mask = (qm * km) != 0.0                               # == torch.bmm(q_mask, k_mask).bool()
    if causal is not None:                                # torch.tril(mask, diagonal=causal)
        rows = lax.broadcasted_iota(jnp.int32, mask.shape, 0)
        cols = lax.broadcasted_iota(jnp.int32, mask.shape, 1)
        mask = jnp.logical_and(mask, cols <= rows + causal)
    neg_bias = jnp.where(mask, 0.0, -1e9).astype(jnp.float32)   # (Lq, Lk)

    # bf16 operands for the two MXU matmuls (softmax stays f32)
    q_b = q.astype(jnp.bfloat16)
    k_b = k.astype(jnp.bfloat16)
    v_b = v.astype(jnp.bfloat16)

    ctxs = []
    for h in range(H):                                    # static unroll (small H)
        lo = h * Hd
        qh = q_b[:, lo:lo + Hd]                           # (Lq, Hd)
        kh = k_b[:, lo:lo + Hd]                           # (Lk, Hd)
        vh = v_b[:, lo:lo + Hd]                           # (Lk, Hd)

        # contract the shared last dim directly (no kh.T / XLU transpose)
        s = lax.dot_general(qh, kh, (((1,), (1,)), ((), ())),
                            preferred_element_type=jnp.float32)  # (Lq, Lk) f32
        s = s + neg_bias
        m = jnp.max(s, axis=-1, keepdims=True)
        p = jnp.exp(s - m)
        denom = jnp.sum(p, axis=-1, keepdims=True)

        if w_out_ref is None:
            p = p * pl.reciprocal(denom, approx=True)     # EUP reciprocal (free slot)
        else:
            p = p / denom                                 # exact rows-sum-to-1 when returned
            w_out_ref[h, 0] = p                           # head-major (H, B, Lq, Lk)

        ctxs.append(jnp.dot(p.astype(jnp.bfloat16), vh,
                            preferred_element_type=jnp.float32))  # (Lq, Hd)

    # ONE lane-dense full-width store per grid step
    o_ref[0] = jnp.concatenate(ctxs, axis=-1).astype(o_ref.dtype)


def fused_mha(query, key, value, qm, km, W, b, *, H: int, Hd: int,
              inv_scale: float, causal, apply_act: bool, return_w: bool,
              vmem_limit: int):
    B, Lq, D = query.shape
    Lk = key.shape[1]

    in_specs = [
        pl.BlockSpec((1, Lq, D), lambda bb: (bb, 0, 0)),
        pl.BlockSpec((1, Lk, D), lambda bb: (bb, 0, 0)),
        pl.BlockSpec((1, Lk, D), lambda bb: (bb, 0, 0)),
        pl.BlockSpec((3, D, D), lambda bb: (0, 0, 0)),    # grid-invariant weights
        pl.BlockSpec((3, D), lambda bb: (0, 0)),          # grid-invariant biases
        pl.BlockSpec((1, Lq, 1), lambda bb: (bb, 0, 0)),
        pl.BlockSpec((1, 1, Lk), lambda bb: (bb, 0, 0)),
    ]
    if return_w:
        out_shape = (jax.ShapeDtypeStruct((B, Lq, D), jnp.float32),
                     jax.ShapeDtypeStruct((H, B, Lq, Lk), jnp.float32))
        out_specs = [pl.BlockSpec((1, Lq, D), lambda bb: (bb, 0, 0)),
                     pl.BlockSpec((H, 1, Lq, Lk), lambda bb: (0, bb, 0, 0))]
    else:
        out_shape = jax.ShapeDtypeStruct((B, Lq, D), jnp.float32)
        out_specs = pl.BlockSpec((1, Lq, D), lambda bb: (bb, 0, 0))

    return pl.pallas_call(
        partial(_fused_mha_kernel, H=H, Hd=Hd, inv_scale=inv_scale, causal=causal,
                apply_act=apply_act, neg_slope=0.2),
        out_shape=out_shape,
        grid_spec=pltpu.PrefetchScalarGridSpec(
            num_scalar_prefetch=0,
            grid=(B,),
            in_specs=in_specs,
            out_specs=out_specs,
        ),
        compiler_params=pltpu.CompilerParams(
            dimension_semantics=("parallel",),
            vmem_limit_bytes=vmem_limit),
    )(query, key, value, W, b, qm, km)


# --------------------------------- module wrapper ----------------------------------
class AttentionMechanismPallas:
    def __init__(self, embed_dim: int, num_heads: int, dropout: float,
                 intercalate_act: bool, key):
        assert embed_dim % num_heads == 0, "Embedding dim must be divisible by number of heads"
        self.d = embed_dim
        self.H = num_heads
        self.Hd = embed_dim // num_heads
        self.intercalate_act = intercalate_act
        self.dropout = dropout                       # identity at inference
        self.inv_scale = 1.0 / math.sqrt(self.Hd)
        self.vmem_limit = _vmem_limit_bytes()

        # xavier_uniform_ for (D, D) weights, zeros for biases.
        # Weights stored in (in, out) layout (x @ W, no in-kernel transpose) and
        # bf16 (MXU-native). To import torch weights: W_here = W_torch.T.astype(bf16)
        bound = math.sqrt(6.0 / (embed_dim + embed_dim))
        kq, kk, kv = jax.random.split(key, 3)
        wq = jax.random.uniform(kq, (embed_dim, embed_dim), jnp.float32, -bound, bound)
        wk = jax.random.uniform(kk, (embed_dim, embed_dim), jnp.float32, -bound, bound)
        wv = jax.random.uniform(kv, (embed_dim, embed_dim), jnp.float32, -bound, bound)
        self.W = jnp.stack([wq, wk, wv]).astype(jnp.bfloat16)   # (3, D, D)
        self.b = jnp.zeros((3, embed_dim), jnp.float32)         # (3, D)

    def __call__(self, query, key, value, q_mask, k_mask, causal=None, return_w=False):
        B, Lq, _ = query.shape
        Lk = key.shape[1]

        qm = q_mask.reshape(B, Lq, 1).astype(jnp.float32)
        km = k_mask.reshape(B, 1, Lk).astype(jnp.float32)

        res = fused_mha(query, key, value, qm, km, self.W, self.b,
                        H=self.H, Hd=self.Hd, inv_scale=self.inv_scale,
                        causal=causal, apply_act=self.intercalate_act,
                        return_w=return_w, vmem_limit=self.vmem_limit)
        if return_w:
            out, attn_w = res
            # head-major (H, B, Lq, Lk) -> contiguous (free) reshape, index = h*B + b,
            # matching torch.tile(..., (H,1,1)) ordering.
            return out, attn_w.reshape(self.H * B, Lq, Lk)
        return res


# -------------------------------------- main ----------------------------------------
if __name__ == "__main__":
    B, L, D, H = 2, 8, 32, 4
    root = jax.random.PRNGKey(0)
    kq, kk, kv, km_key, kparam = jax.random.split(root, 5)

    query = jax.random.normal(kq, (B, L, D), jnp.float32)
    key_t = jax.random.normal(kk, (B, L, D), jnp.float32)
    value = jax.random.normal(kv, (B, L, D), jnp.float32)
    q_mask = jnp.ones((B, L), jnp.float32)
    k_mask = (jax.random.uniform(km_key, (B, L)) > 0.2).astype(jnp.float32)

    mha = AttentionMechanismPallas(embed_dim=D, num_heads=H, dropout=0.0,
                                   intercalate_act=True, key=kparam)

    # with attention weights (exact softmax normalization on this path)
    out, attn_w = mha(query, key_t, value, q_mask, k_mask, causal=0, return_w=True)
    # without attention weights (no O(L^2) HBM writeback path)
    out_only = mha(query, key_t, value, q_mask, k_mask, causal=0, return_w=False)

    jax.block_until_ready((out, attn_w, out_only))
    assert out.shape == (B, L, D) and attn_w.shape == (H * B, L, L)
    assert out_only.shape == (B, L, D)
    assert bool(jnp.all(jnp.isfinite(out))) and bool(jnp.all(jnp.isfinite(attn_w)))
    print("KERNEL_OK")
</pallas_src>

<mosaic_0001>
module attributes {stable_mosaic.version = 11 : i64} {
  func.func @_fused_mha_kernel(%arg0: i32, %arg1: memref<1x8x32xf32, #tpu.memory_space<vmem>>, %arg2: memref<1x8x32xf32, #tpu.memory_space<vmem>>, %arg3: memref<1x8x32xf32, #tpu.memory_space<vmem>>, %arg4: memref<3x32x32xbf16, #tpu.memory_space<vmem>>, %arg5: memref<3x32xf32, #tpu.memory_space<vmem>>, %arg6: memref<1x8x1xf32, #tpu.memory_space<vmem>>, %arg7: memref<1x1x8xf32, #tpu.memory_space<vmem>>, %arg8: memref<1x8x32xf32, #tpu.memory_space<vmem>>, %arg9: memref<4x1x8x8xf32, #tpu.memory_space<vmem>>) attributes {dimension_semantics = [#tpu.dimension_semantics<parallel>], iteration_bounds = array<i64: 2>, scalar_prefetch = 0 : i64, scratch_operands = 0 : i64, tpu.core_type = #tpu.core_type<tc>, window_params = [{transform_indices = @transform_0, window_bounds = array<i64: 1, 8, 32>}, {transform_indices = @transform_1, window_bounds = array<i64: 1, 8, 32>}, {transform_indices = @transform_2, window_bounds = array<i64: 1, 8, 32>}, {pipeline_mode = #tpu.pipeline_mode<synchronous>, transform_indices = @transform_3, window_bounds = array<i64: 3, 32, 32>}, {pipeline_mode = #tpu.pipeline_mode<synchronous>, transform_indices = @transform_4, window_bounds = array<i64: 3, 32>}, {transform_indices = @transform_5, window_bounds = array<i64: 1, 8, 1>}, {transform_indices = @transform_6, window_bounds = array<i64: 1, 1, 8>}, {transform_indices = @transform_7, window_bounds = array<i64: 1, 8, 32>}, {transform_indices = @transform_8, window_bounds = array<i64: 4, 1, 8, 8>}]} {
    %c0 = arith.constant 0 : index
    %c0_0 = arith.constant 0 : index
    %0 = vector.load %arg5[%c0, %c0_0] : memref<3x32xf32, #tpu.memory_space<vmem>>, vector<3x32xf32>
    %c0_1 = arith.constant 0 : index
    %c0_2 = arith.constant 0 : index
    %c0_3 = arith.constant 0 : index
    %1 = vector.load %arg4[%c0_1, %c0_2, %c0_3] : memref<3x32x32xbf16, #tpu.memory_space<vmem>>, vector<1x32x32xbf16>
    %2 = vector.shape_cast %1 : vector<1x32x32xbf16> to vector<32x32xbf16>
    %3 = vector.extract_strided_slice %0 {offsets = [0, 0], sizes = [1, 32], strides = [1, 1]} : vector<3x32xf32> to vector<1x32xf32>
    %c0_4 = arith.constant 0 : index
    %c0_5 = arith.constant 0 : index
    %c0_6 = arith.constant 0 : index
    %4 = vector.load %arg1[%c0_4, %c0_5, %c0_6] : memref<1x8x32xf32, #tpu.memory_space<vmem>>, vector<1x8x32xf32>
    %5 = vector.shape_cast %4 : vector<1x8x32xf32> to vector<8x32xf32>
    %6 = arith.truncf %5 : vector<8x32xf32> to vector<8x32xbf16>
    %cst = arith.constant dense<0.000000e+00> : vector<8x32xf32>
    %7 = tpu.matmul %6, %2, %cst {dimension_numbers = #tpu.dot_dimension_numbers<[1], [0], [0], [1], [0, 0, 1, 1], [], []>} : vector<8x32xbf16>, vector<32x32xbf16>, vector<8x32xf32> -> vector<8x32xf32>
    %8 = vector.broadcast %3 : vector<1x32xf32> to vector<8x32xf32>
    %9 = arith.addf %7, %8 : vector<8x32xf32>
    %cst_7 = arith.constant 0.000000e+00 : f32
    %10 = vector.broadcast %cst_7 : f32 to vector<8x32xf32>
    %11 = arith.cmpf oge, %9, %10 : vector<8x32xf32>
    %cst_8 = arith.constant 2.000000e-01 : f32
    %12 = vector.broadcast %cst_8 : f32 to vector<8x32xf32>
    %13 = arith.mulf %12, %9 : vector<8x32xf32>
    %14 = arith.select %11, %9, %13 : vector<8x32xi1>, vector<8x32xf32>
    %cst_9 = arith.constant 0.353553385 : f32
    %15 = vector.broadcast %cst_9 : f32 to vector<8x32xf32>
    %16 = arith.mulf %14, %15 : vector<8x32xf32>
    %c1 = arith.constant 1 : index
    %c0_10 = arith.constant 0 : index
    %c0_11 = arith.constant 0 : index
    %17 = vector.load %arg4[%c1, %c0_10, %c0_11] : memref<3x32x32xbf16, #tpu.memory_space<vmem>>, vector<1x32x32xbf16>
    %18 = vector.shape_cast %17 : vector<1x32x32xbf16> to vector<32x32xbf16>
    %19 = vector.extract_strided_slice %0 {offsets = [1, 0], sizes = [1, 32], strides = [1, 1]} : vector<3x32xf32> to vector<1x32xf32>
    %c0_12 = arith.constant 0 : index
    %c0_13 = arith.constant 0 : index
    %c0_14 = arith.constant 0 : index
    %20 = vector.load %arg2[%c0_12, %c0_13, %c0_14] : memref<1x8x32xf32, #tpu.memory_space<vmem>>, vector<1x8x32xf32>
    %21 = vector.shape_cast %20 : vector<1x8x32xf32> to vector<8x32xf32>
    %22 = arith.truncf %21 : vector<8x32xf32> to vector<8x32xbf16>
    %cst_15 = arith.constant dense<0.000000e+00> : vector<8x32xf32>
    %23 = tpu.matmul %22, %18, %cst_15 {dimension_numbers = #tpu.dot_dimension_numbers<[1], [0], [0], [1], [0, 0, 1, 1], [], []>} : vector<8x32xbf16>, vector<32x32xbf16>, vector<8x32xf32> -> vector<8x32xf32>
    %24 = vector.broadcast %19 : vector<1x32xf32> to vector<8x32xf32>
    %25 = arith.addf %23, %24 : vector<8x32xf32>
    %cst_16 = arith.constant 0.000000e+00 : f32
    %26 = vector.broadcast %cst_16 : f32 to vector<8x32xf32>
    %27 = arith.cmpf oge, %25, %26 : vector<8x32xf32>
    %cst_17 = arith.constant 2.000000e-01 : f32
    %28 = vector.broadcast %cst_17 : f32 to vector<8x32xf32>
    %29 = arith.mulf %28, %25 : vector<8x32xf32>
    %30 = arith.select %27, %25, %29 : vector<8x32xi1>, vector<8x32xf32>
    %c2 = arith.constant 2 : index
    %c0_18 = arith.constant 0 : index
    %c0_19 = arith.constant 0 : index
    %31 = vector.load %arg4[%c2, %c0_18, %c0_19] : memref<3x32x32xbf16, #tpu.memory_space<vmem>>, vector<1x32x32xbf16>
    %32 = vector.shape_cast %31 : vector<1x32x32xbf16> to vector<32x32xbf16>
    %33 = vector.extract_strided_slice %0 {offsets = [2, 0], sizes = [1, 32], strides = [1, 1]} : vector<3x32xf32> to vector<1x32xf32>
    %c0_20 = arith.constant 0 : index
    %c0_21 = arith.constant 0 : index
    %c0_22 = arith.constant 0 : index
    %34 = vector.load %arg3[%c0_20, %c0_21, %c0_22] : memref<1x8x32xf32, #tpu.memory_space<vmem>>, vector<1x8x32xf32>
    %35 = vector.shape_cast %34 : vector<1x8x32xf32> to vector<8x32xf32>
    %36 = arith.truncf %35 : vector<8x32xf32> to vector<8x32xbf16>
    %cst_23 = arith.constant dense<0.000000e+00> : vector<8x32xf32>
    %37 = tpu.matmul %36, %32, %cst_23 {dimension_numbers = #tpu.dot_dimension_numbers<[1], [0], [0], [1], [0, 0, 1, 1], [], []>} : vector<8x32xbf16>, vector<32x32xbf16>, vector<8x32xf32> -> vector<8x32xf32>
    %38 = vector.broadcast %33 : vector<1x32xf32> to vector<8x32xf32>
    %39 = arith.addf %37, %38 : vector<8x32xf32>
    %cst_24 = arith.constant 0.000000e+00 : f32
    %40 = vector.broadcast %cst_24 : f32 to vector<8x32xf32>
    %41 = arith.cmpf oge, %39, %40 : vector<8x32xf32>
    %cst_25 = arith.constant 2.000000e-01 : f32
    %42 = vector.broadcast %cst_25 : f32 to vector<8x32xf32>
    %43 = arith.mulf %42, %39 : vector<8x32xf32>
    %44 = arith.select %41, %39, %43 : vector<8x32xi1>, vector<8x32xf32>
    %c0_26 = arith.constant 0 : index
    %c0_27 = arith.constant 0 : index
    %c0_28 = arith.constant 0 : index
    %45 = vector.load %arg6[%c0_26, %c0_27, %c0_28] : memref<1x8x1xf32, #tpu.memory_space<vmem>>, vector<1x8x1xf32>
    %46 = vector.shape_cast %45 : vector<1x8x1xf32> to vector<8x1xf32>
    %c0_29 = arith.constant 0 : index
    %c0_30 = arith.constant 0 : index
    %c0_31 = arith.constant 0 : index
    %47 = vector.load %arg7[%c0_29, %c0_30, %c0_31] : memref<1x1x8xf32, #tpu.memory_space<vmem>>, vector<1x1x8xf32>
    %48 = vector.shape_cast %47 : vector<1x1x8xf32> to vector<1x8xf32>
    %49 = vector.broadcast %46 : vector<8x1xf32> to vector<8x8xf32>
    %50 = vector.broadcast %48 : vector<1x8xf32> to vector<8x8xf32>
    %51 = arith.mulf %49, %50 : vector<8x8xf32>
    %cst_32 = arith.constant 0.000000e+00 : f32
    %52 = vector.broadcast %cst_32 : f32 to vector<8x8xf32>
    %53 = arith.cmpf one, %51, %52 : vector<8x8xf32>
    %54 = tpu.iota {dimensions = array<i32: 0>} : vector<8x8xi32>
    %55 = tpu.iota {dimensions = array<i32: 1>} : vector<8x8xi32>
    %c0_i32 = arith.constant 0 : i32
    %56 = vector.broadcast %c0_i32 : i32 to vector<8x8xi32>
    %57 = arith.addi %54, %56 : vector<8x8xi32>
    %58 = arith.cmpi sle, %55, %57 : vector<8x8xi32>
    %59 = arith.andi %53, %58 : vector<8x8xi1>
    %cst_33 = arith.constant 0.000000e+00 : f32
    %cst_34 = arith.constant -1.000000e+09 : f32
    %60 = vector.broadcast %cst_33 : f32 to vector<8x8xf32>
    %61 = vector.broadcast %cst_34 : f32 to vector<8x8xf32>
    %62 = arith.select %59, %60, %61 : vector<8x8xi1>, vector<8x8xf32>
    %63 = arith.truncf %16 : vector<8x32xf32> to vector<8x32xbf16>
    %64 = arith.truncf %30 : vector<8x32xf32> to vector<8x32xbf16>
    %65 = arith.truncf %44 : vector<8x32xf32> to vector<8x32xbf16>
    %66 = vector.extract_strided_slice %63 {offsets = [0, 0], sizes = [8, 8], strides = [1, 1]} : vector<8x32xbf16> to vector<8x8xbf16>
    %67 = vector.extract_strided_slice %64 {offsets = [0, 0], sizes = [8, 8], strides = [1, 1]} : vector<8x32xbf16> to vector<8x8xbf16>
    %68 = vector.extract_strided_slice %65 {offsets = [0, 0], sizes = [8, 8], strides = [1, 1]} : vector<8x32xbf16> to vector<8x8xbf16>
    %cst_35 = arith.constant dense<0.000000e+00> : vector<8x8xf32>
    %69 = tpu.matmul %66, %67, %cst_35 {dimension_numbers = #tpu.dot_dimension_numbers<[1], [1], [0], [0], [0, 0, 1, 0], [], []>} : vector<8x8xbf16>, vector<8x8xbf16>, vector<8x8xf32> -> vector<8x8xf32>
    %70 = arith.addf %69, %62 : vector<8x8xf32>
    %cst_36 = arith.constant dense<0xFF800000> : vector<8xf32>
    %71 = vector.multi_reduction <maximumf>, %70, %cst_36 [1] : vector<8x8xf32> to vector<8xf32>
    %72 = vector.shape_cast %71 : vector<8xf32> to vector<8x1xf32>
    %73 = vector.broadcast %72 : vector<8x1xf32> to vector<8x8xf32>
    %74 = arith.subf %70, %73 : vector<8x8xf32>
    %75 = math.exp %74 : vector<8x8xf32>
    %cst_37 = arith.constant dense<0.000000e+00> : vector<8xf32>
    %76 = vector.multi_reduction <add>, %75, %cst_37 [1] : vector<8x8xf32> to vector<8xf32>
    %77 = vector.shape_cast %76 : vector<8xf32> to vector<8x1xf32>
    %78 = vector.broadcast %77 : vector<8x1xf32> to vector<8x8xf32>
    %79 = arith.divf %75, %78 : vector<8x8xf32>
    %c0_38 = arith.constant 0 : index
    %c0_39 = arith.constant 0 : index
    %c0_40 = arith.constant 0 : index
    %c0_41 = arith.constant 0 : index
    %80 = vector.load %arg9[%c0_38, %c0_39, %c0_40, %c0_41] : memref<4x1x8x8xf32, #tpu.memory_space<vmem>>, vector<1x1x8x8xf32>
    %81 = vector.shape_cast %80 : vector<1x1x8x8xf32> to vector<8x8xf32>
    %82 = vector.shape_cast %79 : vector<8x8xf32> to vector<1x1x8x8xf32>
    tpu.vector_store %arg9[%c0_38, %c0_39, %c0_40, %c0_41], %82 {strides = array<i32>} : memref<4x1x8x8xf32, #tpu.memory_space<vmem>>, vector<1x1x8x8xf32>,
    %83 = arith.truncf %79 : vector<8x8xf32> to vector<8x8xbf16>
    %cst_42 = arith.constant dense<0.000000e+00> : vector<8x8xf32>
    %84 = tpu.matmul %83, %68, %cst_42 {dimension_numbers = #tpu.dot_dimension_numbers<[1], [0], [0], [1], [0, 0, 1, 1], [], []>} : vector<8x8xbf16>, vector<8x8xbf16>, vector<8x8xf32> -> vector<8x8xf32>
    %85 = vector.extract_strided_slice %63 {offsets = [0, 8], sizes = [8, 8], strides = [1, 1]} : vector<8x32xbf16> to vector<8x8xbf16>
    %86 = vector.extract_strided_slice %64 {offsets = [0, 8], sizes = [8, 8], strides = [1, 1]} : vector<8x32xbf16> to vector<8x8xbf16>
    %87 = vector.extract_strided_slice %65 {offsets = [0, 8], sizes = [8, 8], strides = [1, 1]} : vector<8x32xbf16> to vector<8x8xbf16>
    %cst_43 = arith.constant dense<0.000000e+00> : vector<8x8xf32>
    %88 = tpu.matmul %85, %86, %cst_43 {dimension_numbers = #tpu.dot_dimension_numbers<[1], [1], [0], [0], [0, 0, 1, 0], [], []>} : vector<8x8xbf16>, vector<8x8xbf16>, vector<8x8xf32> -> vector<8x8xf32>
    %89 = arith.addf %88, %62 : vector<8x8xf32>
    %cst_44 = arith.constant dense<0xFF800000> : vector<8xf32>
    %90 = vector.multi_reduction <maximumf>, %89, %cst_44 [1] : vector<8x8xf32> to vector<8xf32>
    %91 = vector.shape_cast %90 : vector<8xf32> to vector<8x1xf32>
    %92 = vector.broadcast %91 : vector<8x1xf32> to vector<8x8xf32>
    %93 = arith.subf %89, %92 : vector<8x8xf32>
    %94 = math.exp %93 : vector<8x8xf32>
    %cst_45 = arith.constant dense<0.000000e+00> : vector<8xf32>
    %95 = vector.multi_reduction <add>, %94, %cst_45 [1] : vector<8x8xf32> to vector<8xf32>
    %96 = vector.shape_cast %95 : vector<8xf32> to vector<8x1xf32>
    %97 = vector.broadcast %96 : vector<8x1xf32> to vector<8x8xf32>
    %98 = arith.divf %94, %97 : vector<8x8xf32>
    %c1_46 = arith.constant 1 : index
    %c0_47 = arith.constant 0 : index
    %c0_48 = arith.constant 0 : index
    %c0_49 = arith.constant 0 : index
    %99 = vector.load %arg9[%c1_46, %c0_47, %c0_48, %c0_49] : memref<4x1x8x8xf32, #tpu.memory_space<vmem>>, vector<1x1x8x8xf32>
    %100 = vector.shape_cast %99 : vector<1x1x8x8xf32> to vector<8x8xf32>
    %101 = vector.shape_cast %98 : vector<8x8xf32> to vector<1x1x8x8xf32>
    tpu.vector_store %arg9[%c1_46, %c0_47, %c0_48, %c0_49], %101 {strides = array<i32>} : memref<4x1x8x8xf32, #tpu.memory_space<vmem>>, vector<1x1x8x8xf32>,
    %102 = arith.truncf %98 : vector<8x8xf32> to vector<8x8xbf16>
    %cst_50 = arith.constant dense<0.000000e+00> : vector<8x8xf32>
    %103 = tpu.matmul %102, %87, %cst_50 {dimension_numbers = #tpu.dot_dimension_numbers<[1], [0], [0], [1], [0, 0, 1, 1], [], []>} : vector<8x8xbf16>, vector<8x8xbf16>, vector<8x8xf32> -> vector<8x8xf32>
    %104 = vector.extract_strided_slice %63 {offsets = [0, 16], sizes = [8, 8], strides = [1, 1]} : vector<8x32xbf16> to vector<8x8xbf16>
    %105 = vector.extract_strided_slice %64 {offsets = [0, 16], sizes = [8, 8], strides = [1, 1]} : vector<8x32xbf16> to vector<8x8xbf16>
    %106 = vector.extract_strided_slice %65 {offsets = [0, 16], sizes = [8, 8], strides = [1, 1]} : vector<8x32xbf16> to vector<8x8xbf16>
    %cst_51 = arith.constant dense<0.000000e+00> : vector<8x8xf32>
    %107 = tpu.matmul %104, %105, %cst_51 {dimension_numbers = #tpu.dot_dimension_numbers<[1], [1], [0], [0], [0, 0, 1, 0], [], []>} : vector<8x8xbf16>, vector<8x8xbf16>, vector<8x8xf32> -> vector<8x8xf32>
    %108 = arith.addf %107, %62 : vector<8x8xf32>
    %cst_52 = arith.constant dense<0xFF800000> : vector<8xf32>
    %109 = vector.multi_reduction <maximumf>, %108, %cst_52 [1] : vector<8x8xf32> to vector<8xf32>
    %110 = vector.shape_cast %109 : vector<8xf32> to vector<8x1xf32>
    %111 = vector.broadcast %110 : vector<8x1xf32> to vector<8x8xf32>
    %112 = arith.subf %108, %111 : vector<8x8xf32>
    %113 = math.exp %112 : vector<8x8xf32>
    %cst_53 = arith.constant dense<0.000000e+00> : vector<8xf32>
    %114 = vector.multi_reduction <add>, %113, %cst_53 [1] : vector<8x8xf32> to vector<8xf32>
    %115 = vector.shape_cast %114 : vector<8xf32> to vector<8x1xf32>
    %116 = vector.broadcast %115 : vector<8x1xf32> to vector<8x8xf32>
    %117 = arith.divf %113, %116 : vector<8x8xf32>
    %c2_54 = arith.constant 2 : index
    %c0_55 = arith.constant 0 : index
    %c0_56 = arith.constant 0 : index
    %c0_57 = arith.constant 0 : index
    %118 = vector.load %arg9[%c2_54, %c0_55, %c0_56, %c0_57] : memref<4x1x8x8xf32, #tpu.memory_space<vmem>>, vector<1x1x8x8xf32>
    %119 = vector.shape_cast %118 : vector<1x1x8x8xf32> to vector<8x8xf32>
    %120 = vector.shape_cast %117 : vector<8x8xf32> to vector<1x1x8x8xf32>
    tpu.vector_store %arg9[%c2_54, %c0_55, %c0_56, %c0_57], %120 {strides = array<i32>} : memref<4x1x8x8xf32, #tpu.memory_space<vmem>>, vector<1x1x8x8xf32>,
    %121 = arith.truncf %117 : vector<8x8xf32> to vector<8x8xbf16>
    %cst_58 = arith.constant dense<0.000000e+00> : vector<8x8xf32>
    %122 = tpu.matmul %121, %106, %cst_58 {dimension_numbers = #tpu.dot_dimension_numbers<[1], [0], [0], [1], [0, 0, 1, 1], [], []>} : vector<8x8xbf16>, vector<8x8xbf16>, vector<8x8xf32> -> vector<8x8xf32>
    %123 = vector.extract_strided_slice %63 {offsets = [0, 24], sizes = [8, 8], strides = [1, 1]} : vector<8x32xbf16> to vector<8x8xbf16>
    %124 = vector.extract_strided_slice %64 {offsets = [0, 24], sizes = [8, 8], strides = [1, 1]} : vector<8x32xbf16> to vector<8x8xbf16>
    %125 = vector.extract_strided_slice %65 {offsets = [0, 24], sizes = [8, 8], strides = [1, 1]} : vector<8x32xbf16> to vector<8x8xbf16>
    %cst_59 = arith.constant dense<0.000000e+00> : vector<8x8xf32>
    %126 = tpu.matmul %123, %124, %cst_59 {dimension_numbers = #tpu.dot_dimension_numbers<[1], [1], [0], [0], [0, 0, 1, 0], [], []>} : vector<8x8xbf16>, vector<8x8xbf16>, vector<8x8xf32> -> vector<8x8xf32>
    %127 = arith.addf %126, %62 : vector<8x8xf32>
    %cst_60 = arith.constant dense<0xFF800000> : vector<8xf32>
    %128 = vector.multi_reduction <maximumf>, %127, %cst_60 [1] : vector<8x8xf32> to vector<8xf32>
    %129 = vector.shape_cast %128 : vector<8xf32> to vector<8x1xf32>
    %130 = vector.broadcast %129 : vector<8x1xf32> to vector<8x8xf32>
    %131 = arith.subf %127, %130 : vector<8x8xf32>
    %132 = math.exp %131 : vector<8x8xf32>
    %cst_61 = arith.constant dense<0.000000e+00> : vector<8xf32>
    %133 = vector.multi_reduction <add>, %132, %cst_61 [1] : vector<8x8xf32> to vector<8xf32>
    %134 = vector.shape_cast %133 : vector<8xf32> to vector<8x1xf32>
    %135 = vector.broadcast %134 : vector<8x1xf32> to vector<8x8xf32>
    %136 = arith.divf %132, %135 : vector<8x8xf32>
    %c3 = arith.constant 3 : index
    %c0_62 = arith.constant 0 : index
    %c0_63 = arith.constant 0 : index
    %c0_64 = arith.constant 0 : index
    %137 = vector.load %arg9[%c3, %c0_62, %c0_63, %c0_64] : memref<4x1x8x8xf32, #tpu.memory_space<vmem>>, vector<1x1x8x8xf32>
    %138 = vector.shape_cast %137 : vector<1x1x8x8xf32> to vector<8x8xf32>
    %139 = vector.shape_cast %136 : vector<8x8xf32> to vector<1x1x8x8xf32>
    tpu.vector_store %arg9[%c3, %c0_62, %c0_63, %c0_64], %139 {strides = array<i32>} : memref<4x1x8x8xf32, #tpu.memory_space<vmem>>, vector<1x1x8x8xf32>,
    %140 = arith.truncf %136 : vector<8x8xf32> to vector<8x8xbf16>
    %cst_65 = arith.constant dense<0.000000e+00> : vector<8x8xf32>
    %141 = tpu.matmul %140, %125, %cst_65 {dimension_numbers = #tpu.dot_dimension_numbers<[1], [0], [0], [1], [0, 0, 1, 1], [], []>} : vector<8x8xbf16>, vector<8x8xbf16>, vector<8x8xf32> -> vector<8x8xf32>
    %142 = tpu.concatenate %84, %103, %122, %141 in 1 : vector<8x8xf32>, vector<8x8xf32>, vector<8x8xf32>, vector<8x8xf32> -> vector<8x32xf32>
    %c0_66 = arith.constant 0 : index
    %c0_67 = arith.constant 0 : index
    %c0_68 = arith.constant 0 : index
    %143 = vector.load %arg8[%c0_66, %c0_67, %c0_68] : memref<1x8x32xf32, #tpu.memory_space<vmem>>, vector<1x8x32xf32>
    %144 = vector.shape_cast %143 : vector<1x8x32xf32> to vector<8x32xf32>
    %145 = vector.shape_cast %142 : vector<8x32xf32> to vector<1x8x32xf32>
    tpu.vector_store %arg8[%c0_66, %c0_67, %c0_68], %145 {strides = array<i32>} : memref<1x8x32xf32, #tpu.memory_space<vmem>>, vector<1x8x32xf32>,
    return
  }
  func.func @transform_0(%arg0: i32) -> (i32, i32, i32) {
    %c0_i32 = arith.constant 0 : i32
    %c0_i32_0 = arith.constant 0 : i32
    %c0_i32_1 = arith.constant 0 : i32
    return %arg0, %c0_i32, %c0_i32_0 : i32, i32, i32
  }
  func.func @transform_1(%arg0: i32) -> (i32, i32, i32) {
    %c0_i32 = arith.constant 0 : i32
    %c0_i32_0 = arith.constant 0 : i32
    %c0_i32_1 = arith.constant 0 : i32
    return %arg0, %c0_i32, %c0_i32_0 : i32, i32, i32
  }
  func.func @transform_2(%arg0: i32) -> (i32, i32, i32) {
    %c0_i32 = arith.constant 0 : i32
    %c0_i32_0 = arith.constant 0 : i32
    %c0_i32_1 = arith.constant 0 : i32
    return %arg0, %c0_i32, %c0_i32_0 : i32, i32, i32
  }
  func.func @transform_3(%arg0: i32) -> (i32, i32, i32) {
    %c0_i32 = arith.constant 0 : i32
    %c0_i32_0 = arith.constant 0 : i32
    %c0_i32_1 = arith.constant 0 : i32
    %c0_i32_2 = arith.constant 0 : i32
    return %c0_i32, %c0_i32_0, %c0_i32_1 : i32, i32, i32
  }
  func.func @transform_4(%arg0: i32) -> (i32, i32) {
    %c0_i32 = arith.constant 0 : i32
    %c0_i32_0 = arith.constant 0 : i32
    %c0_i32_1 = arith.constant 0 : i32
    return %c0_i32, %c0_i32_0 : i32, i32
  }
  func.func @transform_5(%arg0: i32) -> (i32, i32, i32) {
    %c0_i32 = arith.constant 0 : i32
    %c0_i32_0 = arith.constant 0 : i32
    %c0_i32_1 = arith.constant 0 : i32
    return %arg0, %c0_i32, %c0_i32_0 : i32, i32, i32
  }
  func.func @transform_6(%arg0: i32) -> (i32, i32, i32) {
    %c0_i32 = arith.constant 0 : i32
    %c0_i32_0 = arith.constant 0 : i32
    %c0_i32_1 = arith.constant 0 : i32
    return %arg0, %c0_i32, %c0_i32_0 : i32, i32, i32
  }
  func.func @transform_7(%arg0: i32) -> (i32, i32, i32) {
    %c0_i32 = arith.constant 0 : i32
    %c0_i32_0 = arith.constant 0 : i32
    %c0_i32_1 = arith.constant 0 : i32
    return %arg0, %c0_i32, %c0_i32_0 : i32, i32, i32
  }
  func.func @transform_8(%arg0: i32) -> (i32, i32, i32, i32) {
    %c0_i32 = arith.constant 0 : i32
    %c0_i32_0 = arith.constant 0 : i32
    %c0_i32_1 = arith.constant 0 : i32
    %c0_i32_2 = arith.constant 0 : i32
    return %c0_i32, %arg0, %c0_i32_0, %c0_i32_1 : i32, i32, i32, i32
  }
}

</mosaic_0001>

<llo_original>
// kernel: tpu_custom_call.1
$region0: #{tpu_custom_call.1}
  #allocation0 [shape = 'u32[]', space=smem, size = 0x4, offset = 0x4, fixed_abs, tag = 'smem constant byte address 0x4 - core index']
  #allocation1 [shape = 'u32[72,128]{1,0:T(1,128)}', space=vmem, size = 0x9000, scoped, tag = 'internal scratch']
  %s0 = inlined_call_operand.vmem [shape: f32[2,8,32], index: 0, kind: input, shape index: {}]
  %s1 = inlined_call_operand.hbm [shape: f32[2,8,32], index: 1, kind: input, shape index: {}]
  %s2 = inlined_call_operand.hbm [shape: f32[2,8,32], index: 2, kind: input, shape index: {}]
  %s3 = inlined_call_operand.hbm [shape: bf16[3,32,32], index: 3, kind: input, shape index: {}]
  %s4 = inlined_call_operand.hbm [shape: f32[3,32], index: 4, kind: input, shape index: {}]
  %s5 = inlined_call_operand.vmem [shape: f32[2,8,1], index: 5, kind: input, shape index: {}]
  %s6 = inlined_call_operand.vmem [shape: f32[2,1,8], index: 6, kind: input, shape index: {}]
  %s7 = inlined_call_operand.hbm [shape: f32[2,8,32], index: 7, kind: output, shape index: {0}]
  %s8 = inlined_call_operand.hbm [shape: f32[4,2,8,8], index: 8, kind: output, shape index: {1}]
  %9 = xla_tuple %s7, %s8
  %s10 = sld [smem:[#allocation0]]
  $region85: #{tpu_custom_call.1} parent=0
    _
  %s12 = ssub.s32 1, %s10
  %s13 = scalar_select 0, %s12, %s10
  $region1: #{tpu_custom_call.1} parent=0
    #allocation2 [shape = 'u8[8192]{0}', space=vmem, size = 0x2000, scoped, tag = 'input window, operand 1']
    #allocation3 [shape = 's32[2]{0}', space=sflag, size = 0x8, scoped, tag = 'scoped memory for tpu_custom_call.1']
    #allocation4 [shape = 's32[2]{0}', space=sflag, size = 0x8, scoped, tag = 'scoped memory for tpu_custom_call.1']
    #allocation5 [shape = 'u8[8192]{0}', space=vmem, size = 0x2000, scoped, tag = 'input window, operand 2']
    #allocation6 [shape = 's32[2]{0}', space=sflag, size = 0x8, scoped, tag = 'scoped memory for tpu_custom_call.1']
    #allocation7 [shape = 'u8[24576]{0}', space=vmem, size = 0x6000, scoped, tag = 'input window, operand 3, single buffered']
    #allocation8 [shape = 'u8[2048]{0}', space=vmem, size = 0x800, scoped, tag = 'input window, operand 4, single buffered']
    #allocation9 [shape = 's32[1]{0}', space=sflag, size = 0x4, scoped, tag = 'scoped memory for tpu_custom_call.1']
    #allocation10 [shape = 'u8[8192]{0}', space=vmem, size = 0x2000, scoped, tag = 'output window, operand 0']
    #allocation11 [shape = 'u8[32768]{0}', space=vmem, size = 0x8000, scoped, tag = 'output window, operand 1']
    #allocation12 [shape = 's32[2]{0}', space=sflag, size = 0x8, scoped, tag = 'scoped memory for tpu_custom_call.1']
    %14 = vsyncpa [#allocation3], 0
    %s15 = scalar_lea.sflag [#allocation3], 1
    %16 = vsyncpa %s15, 0
    %17 = vsyncpa [#allocation6], 0
    %s18 = scalar_lea.sflag [#allocation6], 1
    %19 = vsyncpa %s18, 0
    %20 = vsyncpa [#allocation9], 0
    %21 = vsyncpa [#allocation4], 0
    %s22 = scalar_lea.sflag [#allocation4], 1
    %23 = vsyncpa %s22, 0
    %24 = vsyncpa [#allocation12], 0
    %s25 = scalar_lea.sflag [#allocation12], 1
    %26 = vsyncpa %s25, 0
    loop: start=0, step=1, limit=4
    $region2: #{tpu_custom_call.1} parent=1 // loop_pre_header
      _
    $region3: #{tpu_custom_call.1} parent=1 // loop_header
      %s28 = sphi 0, %s32
      %p29 = scmp.ge.s32.totalorder %s28, 4
      %s38 = sphi 0, %s40
      %s41 = sphi 0, %s38
      %s42 = sphi 0, %s41
      %s58 = sphi 0, %s42
      %s64 = sphi 0, %s66
      %s67 = sphi 0, %s64
      %s68 = sphi 0, %s67
      %s84 = sphi 0, %s68
      %s90 = sphi 0, %s92
      %s93 = sphi 0, %s90
      %s94 = sphi 0, %s93
      %s110 = sphi 0, %s94
      %s114 = sphi 0, %s114
      %s116 = sphi 0, %s114
      %s117 = sphi 0, %s116
      %s131 = sphi 0, %s117
      %s135 = sphi 0, %s135
      %s137 = sphi 0, %s135
      %s138 = sphi 0, %s137
      %s152 = sphi 0, %s138
      %s158 = sphi 0, %s160
      %s161 = sphi 0, %s158
      %s162 = sphi 0, %s161
      %s178 = sphi 0, %s162
      %s184 = sphi 0, %s186
      %s187 = sphi 0, %s184
      %s188 = sphi 0, %s187
      %s204 = sphi 0, %s188
      %s210 = sphi 0, %s212
      %s213 = sphi 0, %s210
      %s214 = sphi 0, %s213
      %s230 = sphi 0, %s214
      %s236 = sphi 0, %s238
      %s239 = sphi 0, %s236
      %s240 = sphi 0, %s239
      %s256 = sphi 0, %s240
    $region4: #{tpu_custom_call.1} parent=1 // loop_header_branch
      %31 = sbr.rel (%p29) target = $region8
    $region5: #{tpu_custom_call.1} parent=1 // loop_body
      %s33 = ssub.s32 %s28, 1
      %s34 = ssub.s32 %s28, 2
      %s35 = sadd.s32 %s28, 1
      %s36 = ssub.s32 %s28, %s35
      %p37 = scmp.eq.s32.totalorder %s36, 0
      %s39 = sadd.s32 %s38, 1
      %s40 = scalar_select %p37, %s38, %s39
      %p43 = pneg %p37
      %p44 = scmp.eq.s32.totalorder %s28, 1
      %p45 = por %p43, %p44
      %p46 = scmp.ne.s32.totalorder %s38, %s41
      %p47 = scmp.eq.s32.totalorder %s28, 0
      %p48 = por %p46, %p47
      %p49 = scmp.ne.s32.totalorder %s38, %s41
      %p50 = scmp.eq.s32.totalorder %s33, 1
      %p51 = por %p49, %p50
      %p52 = scmp.ne.s32.totalorder %s41, %s42
      %p53 = scmp.eq.s32.totalorder %s33, 0
      %p54 = por %p52, %p53
      %p55 = scmp.ne.s32.totalorder %s41, %s42
      %p56 = scmp.eq.s32.totalorder %s34, 1
      %p57 = por %p55, %p56
      %p59 = scmp.ne.s32.totalorder %s42, %s58
      %p60 = scmp.eq.s32.totalorder %s34, 0
      %p61 = por %p59, %p60
      %s62 = ssub.s32 %s28, %s35
      %p63 = scmp.eq.s32.totalorder %s62, 0
      %s65 = sadd.s32 %s64, 1
      %s66 = scalar_select %p63, %s64, %s65
      %p69 = pneg %p63
      %p70 = scmp.eq.s32.totalorder %s28, 1
      %p71 = por %p69, %p70
      %p72 = scmp.ne.s32.totalorder %s64, %s67
      %p73 = scmp.eq.s32.totalorder %s28, 0
      %p74 = por %p72, %p73
      %p75 = scmp.ne.s32.totalorder %s64, %s67
      %p76 = scmp.eq.s32.totalorder %s33, 1
      %p77 = por %p75, %p76
      %p78 = scmp.ne.s32.totalorder %s67, %s68
      %p79 = scmp.eq.s32.totalorder %s33, 0
      %p80 = por %p78, %p79
      %p81 = scmp.ne.s32.totalorder %s67, %s68
      %p82 = scmp.eq.s32.totalorder %s34, 1
      %p83 = por %p81, %p82
      %p85 = scmp.ne.s32.totalorder %s68, %s84
      %p86 = scmp.eq.s32.totalorder %s34, 0
      %p87 = por %p85, %p86
      %s88 = ssub.s32 %s28, %s35
      %p89 = scmp.eq.s32.totalorder %s88, 0
      %s91 = sadd.s32 %s90, 1
      %s92 = scalar_select %p89, %s90, %s91
      %p95 = pneg %p89
      %p96 = scmp.eq.s32.totalorder %s28, 1
      %p97 = por %p95, %p96
      %p98 = scmp.ne.s32.totalorder %s90, %s93
      %p99 = scmp.eq.s32.totalorder %s28, 0
      %p100 = por %p98, %p99
      %p101 = scmp.ne.s32.totalorder %s90, %s93
      %p102 = scmp.eq.s32.totalorder %s33, 1
      %p103 = por %p101, %p102
      %p104 = scmp.ne.s32.totalorder %s93, %s94
      %p105 = scmp.eq.s32.totalorder %s33, 0
      %p106 = por %p104, %p105
      %p107 = scmp.ne.s32.totalorder %s93, %s94
      %p108 = scmp.eq.s32.totalorder %s34, 1
      %p109 = por %p107, %p108
      %p111 = scmp.ne.s32.totalorder %s94, %s110
      %p112 = scmp.eq.s32.totalorder %s34, 0
      %p113 = por %p111, %p112
      %s115 = sadd.s32 %s114, 1
      %p118 = scmp.eq.s32.totalorder %s28, 1
      %p119 = scmp.ne.s32.totalorder %s114, %s116
      %p120 = scmp.eq.s32.totalorder %s28, 0
      %p121 = por %p119, %p120
      %p122 = scmp.ne.s32.totalorder %s114, %s116
      %p123 = scmp.eq.s32.totalorder %s33, 1
      %p124 = por %p122, %p123
      %p125 = scmp.ne.s32.totalorder %s116, %s117
      %p126 = scmp.eq.s32.totalorder %s33, 0
      %p127 = por %p125, %p126
      %p128 = scmp.ne.s32.totalorder %s116, %s117
      %p129 = scmp.eq.s32.totalorder %s34, 1
      %p130 = por %p128, %p129
      %p132 = scmp.ne.s32.totalorder %s117, %s131
      %p133 = scmp.eq.s32.totalorder %s34, 0
      %p134 = por %p132, %p133
      %s136 = sadd.s32 %s135, 1
      %p139 = scmp.eq.s32.totalorder %s28, 1
      %p140 = scmp.ne.s32.totalorder %s135, %s137
      %p141 = scmp.eq.s32.totalorder %s28, 0
      %p142 = por %p140, %p141
      %p143 = scmp.ne.s32.totalorder %s135, %s137
      %p144 = scmp.eq.s32.totalorder %s33, 1
      %p145 = por %p143, %p144
      %p146 = scmp.ne.s32.totalorder %s137, %s138
      %p147 = scmp.eq.s32.totalorder %s33, 0
      %p148 = por %p146, %p147
      %p149 = scmp.ne.s32.totalorder %s137, %s138
      %p150 = scmp.eq.s32.totalorder %s34, 1
      %p151 = por %p149, %p150
      %p153 = scmp.ne.s32.totalorder %s138, %s152
      %p154 = scmp.eq.s32.totalorder %s34, 0
      %p155 = por %p153, %p154
      %s156 = ssub.s32 %s28, %s35
      %p157 = scmp.eq.s32.totalorder %s156, 0
      %s159 = sadd.s32 %s158, 1
      %s160 = scalar_select %p157, %s158, %s159
      %p163 = pneg %p157
      %p164 = scmp.eq.s32.totalorder %s28, 1
      %p165 = por %p163, %p164
      %p166 = scmp.ne.s32.totalorder %s158, %s161
      %p167 = scmp.eq.s32.totalorder %s28, 0
      %p168 = por %p166, %p167
      %p169 = scmp.ne.s32.totalorder %s158, %s161
      %p170 = scmp.eq.s32.totalorder %s33, 1
      %p171 = por %p169, %p170
      %p172 = scmp.ne.s32.totalorder %s161, %s162
      %p173 = scmp.eq.s32.totalorder %s33, 0
      %p174 = por %p172, %p173
      %p175 = scmp.ne.s32.totalorder %s161, %s162
      %p176 = scmp.eq.s32.totalorder %s34, 1
      %p177 = por %p175, %p176
      %p179 = scmp.ne.s32.totalorder %s162, %s178
      %p180 = scmp.eq.s32.totalorder %s34, 0
      %p181 = por %p179, %p180
      %s182 = ssub.s32 %s28, %s35
      %p183 = scmp.eq.s32.totalorder %s182, 0
      %s185 = sadd.s32 %s184, 1
      %s186 = scalar_select %p183, %s184, %s185
      %p189 = pneg %p183
      %p190 = scmp.eq.s32.totalorder %s28, 1
      %p191 = por %p189, %p190
      %p192 = scmp.ne.s32.totalorder %s184, %s187
      %p193 = scmp.eq.s32.totalorder %s28, 0
      %p194 = por %p192, %p193
      %p195 = scmp.ne.s32.totalorder %s184, %s187
      %p196 = scmp.eq.s32.totalorder %s33, 1
      %p197 = por %p195, %p196
      %p198 = scmp.ne.s32.totalorder %s187, %s188
      %p199 = scmp.eq.s32.totalorder %s33, 0
      %p200 = por %p198, %p199
      %p201 = scmp.ne.s32.totalorder %s187, %s188
      %p202 = scmp.eq.s32.totalorder %s34, 1
      %p203 = por %p201, %p202
      %p205 = scmp.ne.s32.totalorder %s188, %s204
      %p206 = scmp.eq.s32.totalorder %s34, 0
      %p207 = por %p205, %p206
      %s208 = ssub.s32 %s28, %s35
      %p209 = scmp.eq.s32.totalorder %s208, 0
      %s211 = sadd.s32 %s210, 1
      %s212 = scalar_select %p209, %s210, %s211
      %p215 = pneg %p209
      %p216 = scmp.eq.s32.totalorder %s28, 1
      %p217 = por %p215, %p216
      %p218 = scmp.ne.s32.totalorder %s210, %s213
      %p219 = scmp.eq.s32.totalorder %s28, 0
      %p220 = por %p218, %p219
      %p221 = scmp.ne.s32.totalorder %s210, %s213
      %p222 = scmp.eq.s32.totalorder %s33, 1
      %p223 = por %p221, %p222
      %p224 = scmp.ne.s32.totalorder %s213, %s214
      %p225 = scmp.eq.s32.totalorder %s33, 0
      %p226 = por %p224, %p225
      %p227 = scmp.ne.s32.totalorder %s213, %s214
      %p228 = scmp.eq.s32.totalorder %s34, 1
      %p229 = por %p227, %p228
      %p231 = scmp.ne.s32.totalorder %s214, %s230
      %p232 = scmp.eq.s32.totalorder %s34, 0
      %p233 = por %p231, %p232
      %s234 = ssub.s32 %s28, %s35
      %p235 = scmp.eq.s32.totalorder %s234, 0
      %s237 = sadd.s32 %s236, 1
      %s238 = scalar_select %p235, %s236, %s237
      %p241 = pneg %p235
      %p242 = scmp.eq.s32.totalorder %s28, 1
      %p243 = por %p241, %p242
      %p244 = scmp.ne.s32.totalorder %s236, %s239
      %p245 = scmp.eq.s32.totalorder %s28, 0
      %p246 = por %p244, %p245
      %p247 = scmp.ne.s32.totalorder %s236, %s239
      %p248 = scmp.eq.s32.totalorder %s33, 1
      %p249 = por %p247, %p248
      %p250 = scmp.ne.s32.totalorder %s239, %s240
      %p251 = scmp.eq.s32.totalorder %s33, 0
      %p252 = por %p250, %p251
      %p253 = scmp.ne.s32.totalorder %s239, %s240
      %p254 = scmp.eq.s32.totalorder %s34, 1
      %p255 = por %p253, %p254
      %p257 = scmp.ne.s32.totalorder %s240, %s256
      %p258 = scmp.eq.s32.totalorder %s34, 0
      %p259 = por %p257, %p258
      %p260 = scmp.le.s32.totalorder 1, %s28
      %p261 = scmp.lt.s32.totalorder %s28, 3
      %p262 = pnand %p260, %p261
      %p263 = pneg %p262
      // Predicated region
      $region9: #{tpu_custom_call.1} parent=5 // pred_check
        _
      $region10: #{tpu_custom_call.1} parent=5 // pred_check_branch
        %265 = sbr.rel (%p262) target = $region12
      $region11: #{tpu_custom_call.1} parent=5 // pred_region
        %s266 = ssub.s32 %s28, 1
        // Predicated region
        $region13: #{tpu_custom_call.1} parent=11 // pred_check
          %p267 = pneg %p127
        $region14: #{tpu_custom_call.1} parent=11 // pred_check_branch
          %269 = sbr.rel (%p267) target = $region16
        $region15: #{tpu_custom_call.1} parent=11 // pred_region
          %271 = vsyncadd [#allocation6], 0
          %s272 = sshll.u32 %s3, 4
          %s273 = int_to_ptr.hbm [resolvable:$true] %s272
          %s274 = sshll.u32 [#allocation7], 4
          %s275 = int_to_ptr.vmem [resolvable:$true] %s274
          %280 = dma.hbm_to_vmem [thread:$0]  %s273, 768, %s275, [#allocation6], 64, 64, 4
        $region16: #{tpu_custom_call.1} parent=11 // pred_fallthru
          _
        // Predicated region
        $region17: #{tpu_custom_call.1} parent=11 // pred_check
          %p281 = pneg %p148
        $region18: #{tpu_custom_call.1} parent=11 // pred_check_branch
          %283 = sbr.rel (%p281) target = $region20
        $region19: #{tpu_custom_call.1} parent=11 // pred_region
          %285 = vsyncadd [#allocation9], 0
          %s287 = sshll.u32 %s4, 4
          %s288 = int_to_ptr.hbm [resolvable:$true] %s287
          %s289 = sshll.u32 [#allocation8], 4
          %s290 = int_to_ptr.vmem [resolvable:$true] %s289
          %292 = dma.hbm_to_vmem [thread:$0]  %s288, 64, %s290, [#allocation9]
        $region20: #{tpu_custom_call.1} parent=11 // pred_fallthru
          _
      $region12: #{tpu_custom_call.1} parent=5 // pred_fallthru
        _
      %p293 = scmp.lt.s32.totalorder %s28, 2
      // Predicated region
      $region21: #{tpu_custom_call.1} parent=5 // pred_check
        %p294 = pneg %p293
      $region22: #{tpu_custom_call.1} parent=5 // pred_check_branch
        %296 = sbr.rel (%p294) target = $region24
      $region23: #{tpu_custom_call.1} parent=5 // pred_region
        // Predicated region
        $region25: #{tpu_custom_call.1} parent=23 // pred_check
          %p297 = pneg %p48
        $region26: #{tpu_custom_call.1} parent=23 // pred_check_branch
          %299 = sbr.rel (%p297) target = $region28
        $region27: #{tpu_custom_call.1} parent=23 // pred_region
          %p300 = scmp.lt.s32.totalorder %s28, 1
          %s301 = scalar_select %p300, %s28, 1
          %s302 = smul.addr %s301, 8
          %s303 = scalar_lea.vmem %s0, %s302
        $region28: #{tpu_custom_call.1} parent=23 // pred_fallthru
          _
        // Predicated region
        $region29: #{tpu_custom_call.1} parent=23 // pred_check
          %p304 = pneg %p74
        $region30: #{tpu_custom_call.1} parent=23 // pred_check_branch
          %306 = sbr.rel (%p304) target = $region32
        $region31: #{tpu_custom_call.1} parent=23 // pred_region
          %s307 = sand.u32 %s64, 1
          %s308 = scalar_lea.sflag [#allocation3], %s307
          %s309 = sand.u32 %s64, 1
          %s310 = smul.addr %s309, 8
          %s311 = scalar_lea.vmem [#allocation2], %s310
          %313 = vsyncadd %s308, 0
          %s314 = smul.addr %s28, 8
          %s315 = scalar_lea.hbm %s1, %s314
          %s317 = sshll.u32 %s315, 4
          %s318 = int_to_ptr.hbm [resolvable:$true] %s317
          %s319 = sshll.u32 %s311, 4
          %s320 = int_to_ptr.vmem [resolvable:$true] %s319
          %322 = dma.hbm_to_vmem [thread:$0]  %s318, 128, %s320, %s308
        $region32: #{tpu_custom_call.1} parent=23 // pred_fallthru
          _
        // Predicated region
        $region33: #{tpu_custom_call.1} parent=23 // pred_check
          %p323 = pneg %p100
        $region34: #{tpu_custom_call.1} parent=23 // pred_check_branch
          %325 = sbr.rel (%p323) target = $region36
        $region35: #{tpu_custom_call.1} parent=23 // pred_region
          %s326 = sand.u32 %s28, 1
          %s327 = scalar_lea.sflag [#allocation6], %s326
          %s328 = sand.u32 %s90, 1
          %s329 = smul.addr %s328, 8
          %s330 = scalar_lea.vmem [#allocation5], %s329
          %332 = vsyncadd %s327, 0
          %s333 = smul.addr %s28, 8
          %s334 = scalar_lea.hbm %s2, %s333
          %s336 = sshll.u32 %s334, 4
          %s337 = int_to_ptr.hbm [resolvable:$true] %s336
          %s338 = sshll.u32 %s330, 4
          %s339 = int_to_ptr.vmem [resolvable:$true] %s338
          %341 = dma.hbm_to_vmem [thread:$0]  %s337, 128, %s339, %s327
        $region36: #{tpu_custom_call.1} parent=23 // pred_fallthru
          _
        // Predicated region
        $region37: #{tpu_custom_call.1} parent=23 // pred_check
          %p342 = pneg %p168
        $region38: #{tpu_custom_call.1} parent=23 // pred_check_branch
          %344 = sbr.rel (%p342) target = $region40
        $region39: #{tpu_custom_call.1} parent=23 // pred_region
          %p345 = scmp.lt.s32.totalorder %s28, 1
          %s346 = scalar_select %p345, %s28, 1
          %s347 = smul.addr %s346, 8
          %s348 = scalar_lea.vmem %s5, %s347
        $region40: #{tpu_custom_call.1} parent=23 // pred_fallthru
          _
        // Predicated region
        $region41: #{tpu_custom_call.1} parent=23 // pred_check
          %p349 = pneg %p194
        $region42: #{tpu_custom_call.1} parent=23 // pred_check_branch
          %351 = sbr.rel (%p349) target = $region44
        $region43: #{tpu_custom_call.1} parent=23 // pred_region
          %p352 = scmp.lt.s32.totalorder %s28, 1
          %s353 = scalar_select %p352, %s28, 1
          %s354 = scalar_lea.vmem %s6, %s353
        $region44: #{tpu_custom_call.1} parent=23 // pred_fallthru
          _
      $region24: #{tpu_custom_call.1} parent=5 // pred_fallthru
        _
      %p355 = scmp.le.s32.totalorder 1, %s28
      %p356 = scmp.lt.s32.totalorder %s28, 3
      %p357 = pnand %p355, %p356
      %p358 = pneg %p357
      // Predicated region
      $region45: #{tpu_custom_call.1} parent=5 // pred_check
        _
      $region46: #{tpu_custom_call.1} parent=5 // pred_check_branch
        %360 = sbr.rel (%p357) target = $region48
      $region47: #{tpu_custom_call.1} parent=5 // pred_region
        %s361 = ssub.s32 %s28, 1
        %s362 = sand.u32 %s67, 1
        %s363 = scalar_lea.sflag [#allocation3], %s362
        %s364 = sand.u32 %s67, 1
        %s365 = smul.addr %s364, 8
        %s366 = scalar_lea.vmem [#allocation2], %s365
        // Predicated region
        $region49: #{tpu_custom_call.1} parent=47 // pred_check
          %p367 = pneg %p80
        $region50: #{tpu_custom_call.1} parent=47 // pred_check_branch
          %369 = sbr.rel (%p367) target = $region52
        $region51: #{tpu_custom_call.1} parent=47 // pred_region
          %371 = dma.done %s363, 128
        $region52: #{tpu_custom_call.1} parent=47 // pred_fallthru
          _
        %s372 = sand.u32 %s33, 1
        %s373 = scalar_lea.sflag [#allocation6], %s372
        %s374 = sand.u32 %s93, 1
        %s375 = smul.addr %s374, 8
        %s376 = scalar_lea.vmem [#allocation5], %s375
        // Predicated region
        $region53: #{tpu_custom_call.1} parent=47 // pred_check
          %p377 = pneg %p106
        $region54: #{tpu_custom_call.1} parent=47 // pred_check_branch
          %379 = sbr.rel (%p377) target = $region56
        $region55: #{tpu_custom_call.1} parent=47 // pred_region
          %381 = dma.done %s373, 128
        $region56: #{tpu_custom_call.1} parent=47 // pred_fallthru
          _
        // Predicated region
        $region57: #{tpu_custom_call.1} parent=47 // pred_check
          %p382 = pneg %p127
        $region58: #{tpu_custom_call.1} parent=47 // pred_check_branch
          %384 = sbr.rel (%p382) target = $region60
        $region59: #{tpu_custom_call.1} parent=47 // pred_region
          %386 = dma.done [#allocation6], 768
        $region60: #{tpu_custom_call.1} parent=47 // pred_fallthru
          _
        // Predicated region
        $region61: #{tpu_custom_call.1} parent=47 // pred_check
          %p387 = pneg %p148
        $region62: #{tpu_custom_call.1} parent=47 // pred_check_branch
          %389 = sbr.rel (%p387) target = $region64
        $region63: #{tpu_custom_call.1} parent=47 // pred_region
          %391 = dma.done [#allocation9], 64
        $region64: #{tpu_custom_call.1} parent=47 // pred_fallthru
          _
        %p392 = scmp.lt.s32.totalorder %s33, 1
        %s393 = scalar_select %p392, %s33, 1
        %s394 = smul.addr %s393, 8
        %s395 = scalar_lea.vmem %s0, %s394
        %p396 = pneg %p54
        %p397 = pneg %p51
        %s398 = sand.u32 %s67, 1
        %s399 = scalar_lea.sflag [#allocation3], %s398
        %s400 = sand.u32 %s67, 1
        %s401 = smul.addr %s400, 8
        %s402 = scalar_lea.vmem [#allocation2], %s401
        %p403 = pneg %p80
        %p404 = pneg %p77
        %s405 = sand.u32 %s33, 1
        %s406 = scalar_lea.sflag [#allocation6], %s405
        %s407 = sand.u32 %s93, 1
        %s408 = smul.addr %s407, 8
        %s409 = scalar_lea.vmem [#allocation5], %s408
        %p410 = pneg %p106
        %p411 = pneg %p103
        %p412 = pneg %p127
        %p413 = pneg %p124
        %p414 = pneg %p148
        %p415 = pneg %p145
        %p416 = scmp.lt.s32.totalorder %s33, 1
        %s417 = scalar_select %p416, %s33, 1
        %s418 = smul.addr %s417, 8
        %s419 = scalar_lea.vmem %s5, %s418
        %p420 = pneg %p174
        %p421 = pneg %p171
        %p422 = scmp.lt.s32.totalorder %s33, 1
        %s423 = scalar_select %p422, %s33, 1
        %s424 = scalar_lea.vmem %s6, %s423
        %p425 = pneg %p200
        %p426 = pneg %p197
        %p427 = pneg %p226
        %p428 = pneg %p223
        %s429 = sand.u32 %s213, 1
        %s430 = scalar_lea.sflag [#allocation4], %s429
        %s431 = sand.u32 %s213, 1
        %s432 = smul.addr %s431, 8
        %s433 = scalar_lea.vmem [#allocation10], %s432
        %p434 = pneg %p252
        %p435 = pneg %p249
        %s436 = sand.u32 %s239, 1
        %s437 = scalar_lea.sflag [#allocation12], %s436
        %s438 = sand.u32 %s239, 1
        %s439 = smul.addr %s438, 32
        %s440 = scalar_lea.vmem [#allocation11], %s439
        %p441 = scmp.lt.s32.totalorder %s33, 1
        %s442 = scalar_select %p441, %s33, 1
        %s443 = smul.addr %s442, 8
        %s444 = scalar_lea.vmem %s0, %s443
        %p445 = scmp.lt.s32.totalorder %s33, 1
        %s446 = scalar_select %p445, %s33, 1
        %s447 = smul.addr %s446, 8
        %s448 = scalar_lea.vmem %s5, %s447
        %p449 = scmp.lt.s32.totalorder %s33, 1
        %s450 = scalar_select %p449, %s33, 1
        %s451 = scalar_lea.vmem %s6, %s450
        %v453 = vld [vmem:[#allocation8] sm:$0x7]
        %v454 = vld [vmem:[#allocation7] sm:$0xf]
        %v455 = vld [vmem:[#allocation7 + $0x4] sm:$0xf]
        %v456 = vld [vmem:[#allocation7 + $0x8] sm:$0xf]
        %v457 = vld [vmem:[#allocation7 + $0xc] sm:$0xf]
        %v458 = vld [vmem:[%s444] sm:$0xff]
        %v459 = vpack.c.bf16 %v458, %v458
        %v460 = vperm.slane %v453, 0
        %v465 = vunpack.c.l.b16 %v454
        %v466 = vunpack.c.l.b16 %v455
        %v467 = vunpack.c.l.b16 %v456
        %v468 = vunpack.c.l.b16 %v457
        %v469 = vpack.c.b16 %v466, %v465
        %v470 = vpack.c.b16 %v468, %v467
        %vm473 = vcmask 261120
        %v475 = vsel %vm473, %v459, 0
        %477 = vmatpush.bf16.msra.mxu0 0
        %478 = vmatpush.bf16.msra.mxu0 0
        %479 = vmatpush.bf16.msra.mxu0 0
        %480 = vmatpush.bf16.msra.mxu0 0
        %481 = vmatpush.bf16.msra.mxu0 0
        %482 = vmatpush.bf16.msra.mxu0 0
        %483 = vmatpush.bf16.msra.mxu0 %v470
        %484 = vmatpush.bf16.msra.mxu0 %v469
        %485 = vmatmul.bf16.gmra.mxu0 %v475
        %v486 = vpop.f32.mrf.mxu0
        %v487 = vadd.f32 %v460, %v486
        %v488 = vpop.f32.mrf.mxu0
        %489 = vdwg.mxu0
        %vm490 = vcmp.ge.f32.partialorder %v487, 0.0
        %v491 = vmul.f32 %v487, 0.2
        %v492 = vsel %vm490, %v487, %v491
        %v493 = vmul.f32 %v492, 0.35355338
        %s494 = scalar_lea.vmem [#allocation7], 16
        %v495 = vld [vmem:[%s494] sm:$0xf]
        %v496 = vld [vmem:[%s494 + $0x4] sm:$0xf]
        %v497 = vld [vmem:[%s494 + $0x8] sm:$0xf]
        %v498 = vld [vmem:[%s494 + $0xc] sm:$0xf]
        %v499 = vld [vmem:[%s366] sm:$0xff]
        %v500 = vpack.c.bf16 %v499, %v499
        %v501 = vperm.slane %v453, 1
        %v506 = vunpack.c.l.b16 %v495
        %v507 = vunpack.c.l.b16 %v496
        %v508 = vunpack.c.l.b16 %v497
        %v509 = vunpack.c.l.b16 %v498
        %v510 = vpack.c.b16 %v507, %v506
        %v511 = vpack.c.b16 %v509, %v508
        %v515 = vsel %vm473, %v500, 0
        %517 = vmatpush.bf16.msra.mxu0 0
        %518 = vmatpush.bf16.msra.mxu0 0
        %519 = vmatpush.bf16.msra.mxu0 0
        %520 = vmatpush.bf16.msra.mxu0 0
        %521 = vmatpush.bf16.msra.mxu0 0
        %522 = vmatpush.bf16.msra.mxu0 0
        %523 = vmatpush.bf16.msra.mxu0 %v511
        %524 = vmatpush.bf16.msra.mxu0 %v510
        %525 = vmatmul.bf16.gmra.mxu0 %v515
        %v526 = vpop.f32.mrf.mxu0
        %v527 = vadd.f32 %v501, %v526
        %v528 = vpop.f32.mrf.mxu0
        %529 = vdwg.mxu0
        %vm530 = vcmp.ge.f32.partialorder %v527, 0.0
        %v531 = vmul.f32 %v527, 0.2
        %v532 = vsel %vm530, %v527, %v531
        %s533 = scalar_lea.vmem [#allocation7], 32
        %v534 = vld [vmem:[%s533] sm:$0xf]
        %v535 = vld [vmem:[%s533 + $0x4] sm:$0xf]
        %v536 = vld [vmem:[%s533 + $0x8] sm:$0xf]
        %v537 = vld [vmem:[%s533 + $0xc] sm:$0xf]
        %v538 = vld [vmem:[%s376] sm:$0xff]
        %v539 = vpack.c.bf16 %v538, %v538
        %v540 = vperm.slane %v453, 2
        %v545 = vunpack.c.l.b16 %v534
        %v546 = vunpack.c.l.b16 %v535
        %v547 = vunpack.c.l.b16 %v536
        %v548 = vunpack.c.l.b16 %v537
        %v549 = vpack.c.b16 %v546, %v545
        %v550 = vpack.c.b16 %v548, %v547
        %v554 = vsel %vm473, %v539, 0
        %556 = vmatpush.bf16.msra.mxu0 0
        %557 = vmatpush.bf16.msra.mxu0 0
        %558 = vmatpush.bf16.msra.mxu0 0
        %559 = vmatpush.bf16.msra.mxu0 0
        %560 = vmatpush.bf16.msra.mxu0 0
        %561 = vmatpush.bf16.msra.mxu0 0
        %562 = vmatpush.bf16.msra.mxu0 %v550
        %563 = vmatpush.bf16.msra.mxu0 %v549
        %564 = vmatmul.bf16.gmra.mxu0 %v554
        %v565 = vpop.f32.mrf.mxu0
        %v566 = vadd.f32 %v540, %v565
        %v567 = vpop.f32.mrf.mxu0
        %568 = vdwg.mxu0
        %vm569 = vcmp.ge.f32.partialorder %v566, 0.0
        %v570 = vmul.f32 %v566, 0.2
        %v571 = vsel %vm569, %v566, %v570
        %v572 = vld [vmem:[%s448] sm:$0xff]
        %v573 = vld [vmem:[%s451] sm:$0x1]
        %575 = vset.pattern.permute.xlu0 0
        %576 = vperm.xlu0 %575, %v572
        %v577 = vpop.permute.xlu0 %576
        %v580 = vperm.slane %v573, 0
        %v582 = vmul.f32 %v577, %v580
        %vm583 = vcmp.ne.f32.partialorder %v582, 0.0
        %v584 = vlaneseq
        %v585 = vshrl.u32 %v584, 7
        %v586 = vlaneseq
        %v587 = vand.u32 %v586, 127
        %vm588 = vcmp.le.s32.totalorder %v587, %v585
        %vm589 = vmand %vm583, %vm588
        %v590 = vsel %vm589, 0.0, -1e+09
        %v591 = vpack.c.bf16 %v493, %v493
        %v592 = vpack.c.bf16 %v532, %v532
        %v593 = vpack.c.bf16 %v571, %v571
        %vm594 = vcmask 64512
        %v596 = vsel %vm594, %v591, 0
        %v599 = vsel %vm594, %v592, 0
        %601 = vmatpush.bf16.xpose.msra.mxu0 0
        %602 = vmatpush.bf16.xpose.msra.mxu0 0
        %603 = vmatpush.bf16.xpose.msra.mxu0 0
        %604 = vmatpush.bf16.xpose.msra.mxu0 0
        %605 = vmatpush.bf16.xpose.msra.mxu0 0
        %606 = vmatpush.bf16.xpose.msra.mxu0 0
        %607 = vmatpush.bf16.xpose.msra.mxu0 0
        %608 = vmatpush.bf16.xpose.msra.mxu0 %v599
        %609 = vmatmul.bf16.gmra.mxu0 %v596
        %v610 = vpop.f32.mrf.mxu0
        %v611 = vadd.f32 %v590, %v610
        %v612 = vpop.f32.mrf.mxu0
        %613 = vdwg.mxu0
        %v614 = vsel %vm594, %v611, -inf
        %615 = vmax.xlane.f32.xlu0 %v614
        %v616 = vpop.xlane.xlu0 %615
        %v617 = vsub.f32 %v611, %v616
        %v618 = vmul.f32 %v617, 1.442695
        %v619 = vpow.pop %v618
        %v620 = vsel %vm594, %v619, 0.0
        %621 = vadd.xlane.f32.xlu0 %v620
        %v622 = vpop.xlane.xlu0 %621
        %v623 = vrcp.pop %v622
        %v624 = vmul.f32 %v622, %v623
        %v625 = vsub.f32 1.0, %v624
        %v626 = vmul.f32 %v623, %v625
        %v627 = vadd.f32 %v623, %v626
        %vm628 = vweird.f32 %v622
        %vm629 = vweird.f32 %v623
        %vm630 = vmor %vm628, %vm629
        %v631 = vsel %vm630, %v623, %v627
        %v632 = vand.u32 2147483647, %v622
        %vm633 = vcmp.eq.f32.partialorder %v632, 8.507059e+37
        %v634 = vand.u32 %v622, 2147483648
        %v635 = vor.u32 1.1754944e-38, %v634
        %v636 = vsel %vm633, %v635, %v631
        %v637 = vmul.f32 %v619, %v636
        %638 = vst.msk [vmem:[%s440] sm:$0xff] %vm594, %v637
        %v639 = vpack.c.bf16 %v637, %v637
        %v641 = vsel %vm594, %v639, 0
        %vm643 = vcmask 1043456
        %v645 = vsel %vm643, %v593, 0
        %647 = vmatpush.bf16.msra.mxu0 0
        %648 = vmatpush.bf16.msra.mxu0 0
        %649 = vmatpush.bf16.msra.mxu0 0
        %650 = vmatpush.bf16.msra.mxu0 0
        %651 = vmatpush.bf16.msra.mxu0 0
        %652 = vmatpush.bf16.msra.mxu0 0
        %653 = vmatpush.bf16.msra.mxu0 0
        %654 = vmatpush.bf16.msra.mxu0 %v645
        %655 = vmatmul.bf16.gmra.mxu0 %v641
        %v656 = vpop.f32.mrf.mxu0
        %v657 = vadd.f32 0.0, %v656
        %v658 = vpop.f32.mrf.mxu0
        %659 = vdwg.mxu0
        %v661 = vunpack.c.l.b16 %v591
        %v662 = vpack.c.b16 %v661, %v661
        %663 = vrot.lane.b32.xlu0 %v662, 120
        %v664 = vpop.permute.xlu0 %663
        %v666 = vunpack.c.l.b16 %v592
        %v667 = vpack.c.b16 %v666, %v666
        %668 = vrot.lane.b32.xlu0 %v667, 120
        %v669 = vpop.permute.xlu0 %668
        %v671 = vsel %vm594, %v664, 0
        %v674 = vsel %vm594, %v669, 0
        %676 = vmatpush.bf16.xpose.msra.mxu0 0
        %677 = vmatpush.bf16.xpose.msra.mxu0 0
        %678 = vmatpush.bf16.xpose.msra.mxu0 0
        %679 = vmatpush.bf16.xpose.msra.mxu0 0
        %680 = vmatpush.bf16.xpose.msra.mxu0 0
        %681 = vmatpush.bf16.xpose.msra.mxu0 0
        %682 = vmatpush.bf16.xpose.msra.mxu0 0
        %683 = vmatpush.bf16.xpose.msra.mxu0 %v674
        %684 = vmatmul.bf16.gmra.mxu0 %v671
        %v685 = vpop.f32.mrf.mxu0
        %v686 = vadd.f32 %v590, %v685
        %v687 = vpop.f32.mrf.mxu0
        %688 = vdwg.mxu0
        %v689 = vsel %vm594, %v686, -inf
        %690 = vmax.xlane.f32.xlu0 %v689
        %v691 = vpop.xlane.xlu0 %690
        %v692 = vsub.f32 %v686, %v691
        %v693 = vmul.f32 %v692, 1.442695
        %v694 = vpow.pop %v693
        %v695 = vsel %vm594, %v694, 0.0
        %696 = vadd.xlane.f32.xlu0 %v695
        %v697 = vpop.xlane.xlu0 %696
        %v698 = vrcp.pop %v697
        %v699 = vmul.f32 %v697, %v698
        %v700 = vsub.f32 1.0, %v699
        %v701 = vmul.f32 %v698, %v700
        %v702 = vadd.f32 %v698, %v701
        %vm703 = vweird.f32 %v697
        %vm704 = vweird.f32 %v698
        %vm705 = vmor %vm703, %vm704
        %v706 = vsel %vm705, %v698, %v702
        %v707 = vand.u32 2147483647, %v697
        %vm708 = vcmp.eq.f32.partialorder %v707, 8.507059e+37
        %v709 = vand.u32 %v697, 2147483648
        %v710 = vor.u32 1.1754944e-38, %v709
        %v711 = vsel %vm708, %v710, %v706
        %v712 = vmul.f32 %v694, %v711
        %s713 = scalar_lea.vmem %s440, 8 [#allocation11]
        %714 = vst.msk [vmem:[%s713] sm:$0xff] %vm594, %v712
        %v715 = vpack.c.bf16 %v712, %v712
        %v717 = vunpack.c.l.b16 %v593
        %v718 = vpack.c.b16 %v717, %v717
        %719 = vrot.lane.b32.xlu0 %v718, 120
        %v720 = vpop.permute.xlu0 %719
        %v722 = vsel %vm594, %v715, 0
        %v725 = vsel %vm643, %v720, 0
        %727 = vmatpush.bf16.msra.mxu0 0
        %728 = vmatpush.bf16.msra.mxu0 0
        %729 = vmatpush.bf16.msra.mxu0 0
        %730 = vmatpush.bf16.msra.mxu0 0
        %731 = vmatpush.bf16.msra.mxu0 0
        %732 = vmatpush.bf16.msra.mxu0 0
        %733 = vmatpush.bf16.msra.mxu0 0
        %734 = vmatpush.bf16.msra.mxu0 %v725
        %735 = vmatmul.bf16.gmra.mxu0 %v722
        %v736 = vpop.f32.mrf.mxu0
        %v737 = vadd.f32 0.0, %v736
        %v738 = vpop.f32.mrf.mxu0
        %739 = vdwg.mxu0
        %740 = vrot.lane.b32.xlu0 %v662, 112
        %v741 = vpop.permute.xlu0 %740
        %742 = vrot.lane.b32.xlu0 %v667, 112
        %v743 = vpop.permute.xlu0 %742
        %v745 = vsel %vm594, %v741, 0
        %v748 = vsel %vm594, %v743, 0
        %750 = vmatpush.bf16.xpose.msra.mxu0 0
        %751 = vmatpush.bf16.xpose.msra.mxu0 0
        %752 = vmatpush.bf16.xpose.msra.mxu0 0
        %753 = vmatpush.bf16.xpose.msra.mxu0 0
        %754 = vmatpush.bf16.xpose.msra.mxu0 0
        %755 = vmatpush.bf16.xpose.msra.mxu0 0
        %756 = vmatpush.bf16.xpose.msra.mxu0 0
        %757 = vmatpush.bf16.xpose.msra.mxu0 %v748
        %758 = vmatmul.bf16.gmra.mxu0 %v745
        %v759 = vpop.f32.mrf.mxu0
        %v760 = vadd.f32 %v590, %v759
        %v761 = vpop.f32.mrf.mxu0
        %762 = vdwg.mxu0
        %v763 = vsel %vm594, %v760, -inf
        %764 = vmax.xlane.f32.xlu0 %v763
        %v765 = vpop.xlane.xlu0 %764
        %v766 = vsub.f32 %v760, %v765
        %v767 = vmul.f32 %v766, 1.442695
        %v768 = vpow.pop %v767
        %v769 = vsel %vm594, %v768, 0.0
        %770 = vadd.xlane.f32.xlu0 %v769
        %v771 = vpop.xlane.xlu0 %770
        %v772 = vrcp.pop %v771
        %v773 = vmul.f32 %v771, %v772
        %v774 = vsub.f32 1.0, %v773
        %v775 = vmul.f32 %v772, %v774
        %v776 = vadd.f32 %v772, %v775
        %vm777 = vweird.f32 %v771
        %vm778 = vweird.f32 %v772
        %vm779 = vmor %vm777, %vm778
        %v780 = vsel %vm779, %v772, %v776
        %v781 = vand.u32 2147483647, %v771
        %vm782 = vcmp.eq.f32.partialorder %v781, 8.507059e+37
        %v783 = vand.u32 %v771, 2147483648
        %v784 = vor.u32 1.1754944e-38, %v783
        %v785 = vsel %vm782, %v784, %v780
        %v786 = vmul.f32 %v768, %v785
        %s787 = scalar_lea.vmem %s440, 16 [#allocation11]
        %788 = vst.msk [vmem:[%s787] sm:$0xff] %vm594, %v786
        %v789 = vpack.c.bf16 %v786, %v786
        %790 = vrot.lane.b32.xlu0 %v718, 112
        %v791 = vpop.permute.xlu0 %790
        %v793 = vsel %vm594, %v789, 0
        %v796 = vsel %vm643, %v791, 0
        %798 = vmatpush.bf16.msra.mxu0 0
        %799 = vmatpush.bf16.msra.mxu0 0
        %800 = vmatpush.bf16.msra.mxu0 0
        %801 = vmatpush.bf16.msra.mxu0 0
        %802 = vmatpush.bf16.msra.mxu0 0
        %803 = vmatpush.bf16.msra.mxu0 0
        %804 = vmatpush.bf16.msra.mxu0 0
        %805 = vmatpush.bf16.msra.mxu0 %v796
        %806 = vmatmul.bf16.gmra.mxu0 %v793
        %v807 = vpop.f32.mrf.mxu0
        %v808 = vadd.f32 0.0, %v807
        %v809 = vpop.f32.mrf.mxu0
        %810 = vdwg.mxu0
        %811 = vrot.lane.b32.xlu0 %v662, 104
        %v812 = vpop.permute.xlu0 %811
        %813 = vrot.lane.b32.xlu0 %v667, 104
        %v814 = vpop.permute.xlu0 %813
        %v816 = vsel %vm594, %v812, 0
        %v819 = vsel %vm594, %v814, 0
        %821 = vmatpush.bf16.xpose.msra.mxu0 0
        %822 = vmatpush.bf16.xpose.msra.mxu0 0
        %823 = vmatpush.bf16.xpose.msra.mxu0 0
        %824 = vmatpush.bf16.xpose.msra.mxu0 0
        %825 = vmatpush.bf16.xpose.msra.mxu0 0
        %826 = vmatpush.bf16.xpose.msra.mxu0 0
        %827 = vmatpush.bf16.xpose.msra.mxu0 0
        %828 = vmatpush.bf16.xpose.msra.mxu0 %v819
        %829 = vmatmul.bf16.gmra.mxu0 %v816
        %v830 = vpop.f32.mrf.mxu0
        %v831 = vadd.f32 %v590, %v830
        %v832 = vpop.f32.mrf.mxu0
        %833 = vdwg.mxu0
        %v834 = vsel %vm594, %v831, -inf
        %835 = vmax.xlane.f32.xlu0 %v834
        %v836 = vpop.xlane.xlu0 %835
        %v837 = vsub.f32 %v831, %v836
        %v838 = vmul.f32 %v837, 1.442695
        %v839 = vpow.pop %v838
        %v840 = vsel %vm594, %v839, 0.0
        %841 = vadd.xlane.f32.xlu0 %v840
        %v842 = vpop.xlane.xlu0 %841
        %v843 = vrcp.pop %v842
        %v844 = vmul.f32 %v842, %v843
        %v845 = vsub.f32 1.0, %v844
        %v846 = vmul.f32 %v843, %v845
        %v847 = vadd.f32 %v843, %v846
        %vm848 = vweird.f32 %v842
        %vm849 = vweird.f32 %v843
        %vm850 = vmor %vm848, %vm849
        %v851 = vsel %vm850, %v843, %v847
        %v852 = vand.u32 2147483647, %v842
        %vm853 = vcmp.eq.f32.partialorder %v852, 8.507059e+37
        %v854 = vand.u32 %v842, 2147483648
        %v855 = vor.u32 1.1754944e-38, %v854
        %v856 = vsel %vm853, %v855, %v851
        %v857 = vmul.f32 %v839, %v856
        %s858 = scalar_lea.vmem %s440, 24 [#allocation11]
        %859 = vst.msk [vmem:[%s858] sm:$0xff] %vm594, %v857
        %v860 = vpack.c.bf16 %v857, %v857
        %861 = vrot.lane.b32.xlu0 %v718, 104
        %v862 = vpop.permute.xlu0 %861
        %v864 = vsel %vm594, %v860, 0
        %v867 = vsel %vm643, %v862, 0
        %869 = vmatpush.bf16.msra.mxu0 0
        %870 = vmatpush.bf16.msra.mxu0 0
        %871 = vmatpush.bf16.msra.mxu0 0
        %872 = vmatpush.bf16.msra.mxu0 0
        %873 = vmatpush.bf16.msra.mxu0 0
        %874 = vmatpush.bf16.msra.mxu0 0
        %875 = vmatpush.bf16.msra.mxu0 0
        %876 = vmatpush.bf16.msra.mxu0 %v867
        %877 = vmatmul.bf16.gmra.mxu0 %v864
        %v878 = vpop.f32.mrf.mxu0
        %v879 = vadd.f32 0.0, %v878
        %v880 = vpop.f32.mrf.mxu0
        %881 = vdwg.mxu0
        %883 = vrot.lane.b32.xlu0 %v737, 8
        %v884 = vpop.permute.xlu0 %883
        %887 = vrot.lane.b32.xlu0 %v808, 16
        %v888 = vpop.permute.xlu0 %887
        %891 = vrot.lane.b32.xlu0 %v879, 24
        %v892 = vpop.permute.xlu0 %891
        %v894 = vsel %vm594, %v657, %v884
        %vm895 = vcmask 130048
        %v896 = vsel %vm895, %v894, %v888
        %vm897 = vcmask 195584
        %v898 = vsel %vm897, %v896, %v892
        %899 = vst.msk [vmem:[%s433] sm:$0xff] %vm473, %v898
        %s900 = sand.u32 %s213, 1
        %s901 = scalar_lea.sflag [#allocation4], %s900
        %s902 = sand.u32 %s213, 1
        %s903 = smul.addr %s902, 8
        %s904 = scalar_lea.vmem [#allocation10], %s903
        %s905 = sand.u32 %s239, 1
        %s906 = scalar_lea.sflag [#allocation12], %s905
        %s907 = sand.u32 %s239, 1
        %s908 = smul.addr %s907, 32
        %s909 = scalar_lea.vmem [#allocation11], %s908
        // Predicated region
        $region65: #{tpu_custom_call.1} parent=47 // pred_check
          %p910 = pneg %p223
        $region66: #{tpu_custom_call.1} parent=47 // pred_check_branch
          %912 = sbr.rel (%p910) target = $region68
        $region67: #{tpu_custom_call.1} parent=47 // pred_region
          %914 = vsyncadd %s901, 0
          %s915 = smul.addr %s33, 8
          %s916 = scalar_lea.hbm %s7, %s915
          %s918 = sshll.u32 %s904, 4
          %s919 = int_to_ptr.vmem [resolvable:$true] %s918
          %s920 = sshll.u32 %s916, 4
          %s921 = int_to_ptr.hbm [resolvable:$true] %s920
          %923 = dma.vmem_to_hbm [thread:$0]  %s919, 128, %s921, %s901
        $region68: #{tpu_custom_call.1} parent=47 // pred_fallthru
          _
        // Predicated region
        $region69: #{tpu_custom_call.1} parent=47 // pred_check
          %p924 = pneg %p249
        $region70: #{tpu_custom_call.1} parent=47 // pred_check_branch
          %926 = sbr.rel (%p924) target = $region72
        $region71: #{tpu_custom_call.1} parent=47 // pred_region
          %928 = vsyncadd %s906, 0
          %s929 = smul.addr %s33, 8
          %s930 = scalar_lea.hbm %s8, %s929
          %s931 = sshll.u32 %s909, 4
          %s932 = int_to_ptr.vmem [resolvable:$true] %s931
          %s933 = sshll.u32 %s930, 4
          %s934 = int_to_ptr.hbm [resolvable:$true] %s933
          %939 = dma.vmem_to_hbm [thread:$0]  %s932, 512, %s934, %s906, 128, 256, 8
        $region72: #{tpu_custom_call.1} parent=47 // pred_fallthru
          _
      $region48: #{tpu_custom_call.1} parent=5 // pred_fallthru
        _
      %p940 = scmp.le.s32.totalorder 2, %s28
      // Predicated region
      $region73: #{tpu_custom_call.1} parent=5 // pred_check
        %p941 = pneg %p940
      $region74: #{tpu_custom_call.1} parent=5 // pred_check_branch
        %943 = sbr.rel (%p941) target = $region76
      $region75: #{tpu_custom_call.1} parent=5 // pred_region
        %s944 = ssub.s32 %s28, 2
        // Predicated region
        $region77: #{tpu_custom_call.1} parent=75 // pred_check
          %p945 = pneg %p229
        $region78: #{tpu_custom_call.1} parent=75 // pred_check_branch
          %947 = sbr.rel (%p945) target = $region80
        $region79: #{tpu_custom_call.1} parent=75 // pred_region
          %s948 = sand.u32 %s214, 1
          %s949 = scalar_lea.sflag [#allocation4], %s948
          %s950 = sand.u32 %s214, 1
          %s951 = smul.addr %s950, 8
          %s952 = scalar_lea.vmem [#allocation10], %s951
          %954 = dma.done %s949, 128
        $region80: #{tpu_custom_call.1} parent=75 // pred_fallthru
          _
        // Predicated region
        $region81: #{tpu_custom_call.1} parent=75 // pred_check
          %p955 = pneg %p255
        $region82: #{tpu_custom_call.1} parent=75 // pred_check_branch
          %957 = sbr.rel (%p955) target = $region84
        $region83: #{tpu_custom_call.1} parent=75 // pred_region
          %s958 = sand.u32 %s240, 1
          %s959 = scalar_lea.sflag [#allocation12], %s958
          %s960 = sand.u32 %s240, 1
          %s961 = smul.addr %s960, 32
          %s962 = scalar_lea.vmem [#allocation11], %s961
          %964 = dma.done %s959, 512
        $region84: #{tpu_custom_call.1} parent=75 // pred_fallthru
          _
      $region76: #{tpu_custom_call.1} parent=5 // pred_fallthru
        _
    $region6: #{tpu_custom_call.1} parent=1 // loop_footer
      %s32 = sadd.s32 1, %s28
    $region7: #{tpu_custom_call.1} parent=1 // loop_footer_branch
      %27 = sbr.rel target = $region3
    $region8: #{tpu_custom_call.1} parent=1 // loop_exit
      _
    %965 = vsyncpa [#allocation3], 1
    %s966 = scalar_lea.sflag [#allocation3], 1
    %967 = vsyncpa %s966, 1
    %968 = vsyncpa [#allocation6], 1
    %s969 = scalar_lea.sflag [#allocation6], 1
    %970 = vsyncpa %s969, 1
    %971 = vsyncpa [#allocation9], 1
    %972 = vsyncpa [#allocation4], 1
    %s973 = scalar_lea.sflag [#allocation4], 1
    %974 = vsyncpa %s973, 1
    %975 = vsyncpa [#allocation12], 1
    %s976 = scalar_lea.sflag [#allocation12], 1
    %977 = vsyncpa %s976, 1

</llo_original>
